<compile_context>
chip_gen: v5e
topology: v5e:2x2
jax: 0.10.0
libtpu: 0.0.40
codegen_flags: <defaults>
</compile_context>

<pallas_src>
import functools

import jax
import jax.numpy as jnp
import numpy as np
from jax.experimental import pallas as pl
from jax.experimental.pallas import tpu as pltpu

EPS = 1e-5
_VMEM_LIMIT = 32 * 1024 * 1024          # scoped VMEM request, safe on v5e/v6e/v7x
_TARGET_BLOCK_BYTES = 2 * 1024 * 1024   # per-step x tile (double-buffered in + out)


def _bn_stats_kernel(x_ref, bnp_ref, out_ref, sum_ref, ssq_ref, *,
                     bn_off, inv_count):
    """Accumulate BN-half per-channel sum / sum-of-squares across the N grid
    axis; on the last step emit folded (scale, shift)."""
    i = pl.program_id(0)

    @pl.when(i == 0)
    def _init():
        sum_ref[...] = jnp.zeros_like(sum_ref)
        ssq_ref[...] = jnp.zeros_like(ssq_ref)

    # Ref slice (view): only the BN half of the VMEM block is loaded.
    x2 = x_ref[:, bn_off:, :].astype(jnp.float32)         # (nb, c2, HW)
    s = jnp.sum(x2, axis=0)                               # (c2, HW)
    sq = jnp.sum(x2 * x2, axis=0)                         # (c2, HW)
    sum_ref[...] += jnp.sum(s, axis=1, keepdims=True)     # (c2, 1)
    ssq_ref[...] += jnp.sum(sq, axis=1, keepdims=True)    # (c2, 1)

    @pl.when(i == pl.num_programs(0) - 1)
    def _finalize():
        mean = sum_ref[...] * inv_count
        # One-pass E[x^2] - E[x]^2; fine in f32 for normalization purposes.
        var = ssq_ref[...] * inv_count - mean * mean
        w = bnp_ref[:, 0:1]
        b = bnp_ref[:, 1:2]
        scale = w * jax.lax.rsqrt(var + EPS)
        shift = b - mean * scale
        out_ref[:, 0:1] = scale
        out_ref[:, 1:2] = shift


def _ibn_apply_kernel(x_ref, inp_ref, bns_ref, o_ref, *, half, inv_hw):
    """Per N-block: InstanceNorm stats for the first `half` channels, BN
    scale/shift (precomputed) for the rest, folded into one per-(n, c)
    (scale, shift) pair so the whole block is a single dense FMA + store."""
    nb = x_ref.shape[0]
    c2 = bns_ref.shape[0]

    x = x_ref[...].astype(jnp.float32)                     # (nb, C, HW)
    x1 = x[:, :half, :]                                    # IN half

    # ---- InstanceNorm2d statistics (per sample, per channel, over spatial) --
    mu1 = jnp.sum(x1, axis=2, keepdims=True) * inv_hw      # (nb, half, 1)
    var1 = jnp.sum(x1 * x1, axis=2, keepdims=True) * inv_hw - mu1 * mu1
    w1 = inp_ref[:, 0:1].reshape(1, half, 1)
    b1 = inp_ref[:, 1:2].reshape(1, half, 1)
    scale1 = w1 * jax.lax.rsqrt(var1 + EPS)                 # (nb, half, 1)
    shift1 = b1 - mu1 * scale1

    # ---- BatchNorm2d folded per-channel scale/shift (broadcast over nb) -----
    scale2 = jnp.broadcast_to(bns_ref[:, 0:1].reshape(1, c2, 1), (nb, c2, 1))
    shift2 = jnp.broadcast_to(bns_ref[:, 1:2].reshape(1, c2, 1), (nb, c2, 1))

    # Combined per-(n, c) affine -> single full-tile FMA and one dense store.
    scale = jnp.concatenate([scale1, scale2], axis=1)       # (nb, C, 1)
    shift = jnp.concatenate([shift1, shift2], axis=1)       # (nb, C, 1)
    o_ref[...] = (x * scale + shift).astype(o_ref.dtype)


def _pick_samples_per_block(n, per_sample_bytes):
    """Largest divisor of n that respects the VMEM tile budget; keep >= 2 grid
    steps when possible so megacore / pipelining has work to split."""
    nb_max = max(1, _TARGET_BLOCK_BYTES // max(1, per_sample_bytes))
    if n > 1:
        nb_max = max(1, min(nb_max, n // 2))
    nb = 1
    for d in range(1, min(n, nb_max) + 1):
        if n % d == 0:
            nb = d
    return nb


def ibn_forward(x, in_w, in_b, bn_w, bn_b):
    """x: (N, C, H, W) NCHW, matching the PyTorch module."""
    N, C, H, W = x.shape
    half = int(in_w.shape[0])
    c2 = C - half
    assert bn_w.shape[0] == c2 and half >= 1 and c2 >= 1

    HW = H * W
    itemsize = jnp.dtype(x.dtype).itemsize
    # VMEM tile footprint estimate uses hardware-padded dims (8 sublane, 128 lane).
    hw_pad = ((HW + 127) // 128) * 128
    c_pad = ((C + 7) // 8) * 8
    per_sample_bytes = c_pad * hw_pad * max(itemsize, 4)

    xf = x.reshape(N, C, HW)                 # contiguous -> free reshape; lane dim = HW

    nb = _pick_samples_per_block(N, per_sample_bytes)
    grid = (N // nb,)

    # Pack per-channel params as (Chalf, 2) [w | b]: one tiny constant block each.
    in_pack = jnp.stack([in_w, in_b], axis=-1).astype(jnp.float32)   # (half, 2)
    bn_pack = jnp.stack([bn_w, bn_b], axis=-1).astype(jnp.float32)   # (c2, 2)

    # ---------------- pass 1: BN-half statistics -> folded (scale, shift) ----
    if c2 % 8 == 0 and half % c2 == 0:
        # Aligned split: DMA only the BN half (channel block index half // c2).
        cblk = half // c2
        x_stats_spec = pl.BlockSpec((nb, c2, HW), lambda i: (i, cblk, 0))
        bn_off = 0
        stats_read_c = c2
    else:
        # Misaligned split (e.g. toy half=2): read full C, slice the ref in-kernel.
        x_stats_spec = pl.BlockSpec((nb, C, HW), lambda i: (i, 0, 0))
        bn_off = half
        stats_read_c = C

    stats_kernel = functools.partial(
        _bn_stats_kernel, bn_off=bn_off, inv_count=1.0 / float(N * HW))
    bn_scale_shift = pl.pallas_call(
        stats_kernel,
        out_shape=jax.ShapeDtypeStruct((c2, 2), jnp.float32),
        grid=grid,
        in_specs=[
            x_stats_spec,
            pl.BlockSpec((c2, 2), lambda i: (0, 0)),
        ],
        out_specs=pl.BlockSpec((c2, 2), lambda i: (0, 0)),
        scratch_shapes=[
            pltpu.VMEM((c2, 1), jnp.float32),    # per-channel sum accumulator
            pltpu.VMEM((c2, 1), jnp.float32),    # per-channel sum-of-squares
        ],
        compiler_params=pltpu.CompilerParams(
            dimension_semantics=("arbitrary",),   # reduction over N blocks
            vmem_limit_bytes=_VMEM_LIMIT),
        cost_estimate=pl.CostEstimate(
            flops=3 * N * c2 * HW,
            transcendentals=c2,
            bytes_accessed=N * stats_read_c * HW * itemsize),
    )(xf, bn_pack)

    # ---------------- pass 2: apply (IN stats per sample + folded affines) ---
    apply_kernel = functools.partial(
        _ibn_apply_kernel, half=half, inv_hw=1.0 / float(HW))
    out_flat = pl.pallas_call(
        apply_kernel,
        out_shape=jax.ShapeDtypeStruct((N, C, HW), x.dtype),
        grid=grid,
        in_specs=[
            pl.BlockSpec((nb, C, HW), lambda i: (i, 0, 0)),
            pl.BlockSpec((half, 2), lambda i: (0, 0)),
            pl.BlockSpec((c2, 2), lambda i: (0, 0)),
        ],
        out_specs=pl.BlockSpec((nb, C, HW), lambda i: (i, 0, 0)),
        compiler_params=pltpu.CompilerParams(
            dimension_semantics=("parallel",),    # independent per N block
            vmem_limit_bytes=_VMEM_LIMIT),
        cost_estimate=pl.CostEstimate(
            flops=2 * N * C * HW + 3 * N * half * HW,
            transcendentals=N * half + c2,
            bytes_accessed=2 * N * C * HW * itemsize),
    )(xf, in_pack, bn_scale_shift)

    return out_flat.reshape(N, C, H, W)


def ibn_reference(x, in_w, in_b, bn_w, bn_b):
    """Pure-JAX reference matching PyTorch IBN.forward (BN in training mode)."""
    half = in_w.shape[0]
    x1, x2 = x[:, :half], x[:, half:]

    mu1 = jnp.mean(x1, axis=(2, 3), keepdims=True)
    var1 = jnp.var(x1, axis=(2, 3), keepdims=True)
    y1 = (x1 - mu1) / jnp.sqrt(var1 + EPS)
    y1 = y1 * in_w[None, :, None, None] + in_b[None, :, None, None]

    mu2 = jnp.mean(x2, axis=(0, 2, 3), keepdims=True)
    var2 = jnp.var(x2, axis=(0, 2, 3), keepdims=True)
    y2 = (x2 - mu2) / jnp.sqrt(var2 + EPS)
    y2 = y2 * bn_w[None, :, None, None] + bn_b[None, :, None, None]

    return jnp.concatenate([y1, y2], axis=1)


if __name__ == "__main__":
    def _run_case(key, N, C, H, W):
        half = C // 2
        kx, kiw, kib, kbw, kbb = jax.random.split(key, 5)
        x = jax.random.normal(kx, (N, C, H, W), dtype=jnp.float32)
        # PyTorch defaults are weight=1, bias=0; perturb so the affine path is used.
        in_w = 1.0 + 0.1 * jax.random.normal(kiw, (half,), dtype=jnp.float32)
        in_b = 0.1 * jax.random.normal(kib, (half,), dtype=jnp.float32)
        bn_w = 1.0 + 0.1 * jax.random.normal(kbw, (C - half,), dtype=jnp.float32)
        bn_b = 0.1 * jax.random.normal(kbb, (C - half,), dtype=jnp.float32)

        out = ibn_forward(x, in_w, in_b, bn_w, bn_b)
        jax.block_until_ready(out)
        ref = ibn_reference(x, in_w, in_b, bn_w, bn_b)
        np.testing.assert_allclose(np.asarray(out), np.asarray(ref),
                                   rtol=1e-4, atol=1e-4)

    key = jax.random.PRNGKey(0)
    k1, k2, k3 = jax.random.split(key, 3)
    _run_case(k1, 2, 4, 16, 16)    # IBN(planes=4): half=2 (misaligned channel split)
    _run_case(k2, 4, 16, 16, 16)   # aligned split (c2 % 8 == 0): narrow BN-stats DMA
    _run_case(k3, 2, 8, 12, 12)    # HW=144: ragged lane dim handled without HBM padding
    print("KERNEL_OK")
</pallas_src>

<mosaic_0001>
module attributes {stable_mosaic.version = 11 : i64} {
  func.func @_bn_stats_kernel(%arg0: i32, %arg1: memref<1x4x256xf32, #tpu.memory_space<vmem>>, %arg2: memref<2x2xf32, #tpu.memory_space<vmem>>, %arg3: memref<2x2xf32, #tpu.memory_space<vmem>>, %arg4: memref<2x1xf32, #tpu.memory_space<vmem>>, %arg5: memref<2x1xf32, #tpu.memory_space<vmem>>) attributes {dimension_semantics = [#tpu.dimension_semantics<arbitrary>], iteration_bounds = array<i64: 2>, scalar_prefetch = 0 : i64, scratch_operands = 2 : i64, tpu.core_type = #tpu.core_type<tc>, window_params = [{transform_indices = @transform_0, window_bounds = array<i64: 1, 4, 256>}, {pipeline_mode = #tpu.pipeline_mode<synchronous>, transform_indices = @transform_1, window_bounds = array<i64: 2, 2>}, {pipeline_mode = #tpu.pipeline_mode<synchronous>, transform_indices = @transform_2, window_bounds = array<i64: 2, 2>}]} {
    %c0_i32 = arith.constant 0 : i32
    %0 = arith.cmpi eq, %arg0, %c0_i32 : i32
    %1 = arith.extui %0 : i1 to i32
    %c0_i32_0 = arith.constant 0 : i32
    %2 = arith.cmpi ne, %1, %c0_i32_0 : i32
    scf.if %2 {
      %cst_14 = arith.constant 0.000000e+00 : f32
      %20 = vector.broadcast %cst_14 : f32 to vector<2x1xf32>
      %c0_15 = arith.constant 0 : index
      %c0_16 = arith.constant 0 : index
      %21 = vector.load %arg4[%c0_15, %c0_16] : memref<2x1xf32, #tpu.memory_space<vmem>>, vector<2x1xf32>
      tpu.vector_store %arg4[%c0_15, %c0_16], %20 {strides = array<i32>} : memref<2x1xf32, #tpu.memory_space<vmem>>, vector<2x1xf32>,
      %cst_17 = arith.constant 0.000000e+00 : f32
      %22 = vector.broadcast %cst_17 : f32 to vector<2x1xf32>
      %c0_18 = arith.constant 0 : index
      %c0_19 = arith.constant 0 : index
      %23 = vector.load %arg5[%c0_18, %c0_19] : memref<2x1xf32, #tpu.memory_space<vmem>>, vector<2x1xf32>
      tpu.vector_store %arg5[%c0_18, %c0_19], %22 {strides = array<i32>} : memref<2x1xf32, #tpu.memory_space<vmem>>, vector<2x1xf32>,
    } else {
    }
    %c0 = arith.constant 0 : index
    %c2 = arith.constant 2 : index
    %c0_1 = arith.constant 0 : index
    %3 = vector.load %arg1[%c0, %c2, %c0_1] : memref<1x4x256xf32, #tpu.memory_space<vmem>>, vector<1x2x256xf32>
    %cst = arith.constant dense<0.000000e+00> : vector<2x256xf32>
    %4 = vector.multi_reduction <add>, %3, %cst [0] : vector<1x2x256xf32> to vector<2x256xf32>
    %5 = arith.mulf %3, %3 : vector<1x2x256xf32>
    %cst_2 = arith.constant dense<0.000000e+00> : vector<2x256xf32>
    %6 = vector.multi_reduction <add>, %5, %cst_2 [0] : vector<1x2x256xf32> to vector<2x256xf32>
    %c0_3 = arith.constant 0 : index
    %c0_4 = arith.constant 0 : index
    %7 = vector.load %arg4[%c0_3, %c0_4] : memref<2x1xf32, #tpu.memory_space<vmem>>, vector<2x1xf32>
    %cst_5 = arith.constant dense<0.000000e+00> : vector<2xf32>
    %8 = vector.multi_reduction <add>, %4, %cst_5 [1] : vector<2x256xf32> to vector<2xf32>
    %9 = vector.shape_cast %8 : vector<2xf32> to vector<2x1xf32>
    %10 = arith.addf %7, %9 : vector<2x1xf32>
    %c0_6 = arith.constant 0 : index
    %c0_7 = arith.constant 0 : index
    %11 = vector.load %arg4[%c0_6, %c0_7] : memref<2x1xf32, #tpu.memory_space<vmem>>, vector<2x1xf32>
    tpu.vector_store %arg4[%c0_6, %c0_7], %10 {strides = array<i32>} : memref<2x1xf32, #tpu.memory_space<vmem>>, vector<2x1xf32>,
    %c0_8 = arith.constant 0 : index
    %c0_9 = arith.constant 0 : index
    %12 = vector.load %arg5[%c0_8, %c0_9] : memref<2x1xf32, #tpu.memory_space<vmem>>, vector<2x1xf32>
    %cst_10 = arith.constant dense<0.000000e+00> : vector<2xf32>
    %13 = vector.multi_reduction <add>, %6, %cst_10 [1] : vector<2x256xf32> to vector<2xf32>
    %14 = vector.shape_cast %13 : vector<2xf32> to vector<2x1xf32>
    %15 = arith.addf %12, %14 : vector<2x1xf32>
    %c0_11 = arith.constant 0 : index
    %c0_12 = arith.constant 0 : index
    %16 = vector.load %arg5[%c0_11, %c0_12] : memref<2x1xf32, #tpu.memory_space<vmem>>, vector<2x1xf32>
    tpu.vector_store %arg5[%c0_11, %c0_12], %15 {strides = array<i32>} : memref<2x1xf32, #tpu.memory_space<vmem>>, vector<2x1xf32>,
    %c1_i32 = arith.constant 1 : i32
    %17 = arith.cmpi eq, %arg0, %c1_i32 : i32
    %18 = arith.extui %17 : i1 to i32
    %c0_i32_13 = arith.constant 0 : i32
    %19 = arith.cmpi ne, %18, %c0_i32_13 : i32
    scf.if %19 {
      %c0_14 = arith.constant 0 : index
      %c0_15 = arith.constant 0 : index
      %20 = vector.load %arg4[%c0_14, %c0_15] : memref<2x1xf32, #tpu.memory_space<vmem>>, vector<2x1xf32>
      %cst_16 = arith.constant 0.001953125 : f32
      %21 = vector.broadcast %cst_16 : f32 to vector<2x1xf32>
      %22 = arith.mulf %20, %21 : vector<2x1xf32>
      %c0_17 = arith.constant 0 : index
      %c0_18 = arith.constant 0 : index
      %23 = vector.load %arg5[%c0_17, %c0_18] : memref<2x1xf32, #tpu.memory_space<vmem>>, vector<2x1xf32>
      %cst_19 = arith.constant 0.001953125 : f32
      %24 = vector.broadcast %cst_19 : f32 to vector<2x1xf32>
      %25 = arith.mulf %23, %24 : vector<2x1xf32>
      %26 = arith.mulf %22, %22 : vector<2x1xf32>
      %27 = arith.subf %25, %26 : vector<2x1xf32>
      %c0_20 = arith.constant 0 : index
      %c0_21 = arith.constant 0 : index
      %28 = vector.load %arg2[%c0_20, %c0_21] : memref<2x2xf32, #tpu.memory_space<vmem>>, vector<2x1xf32>
      %c0_22 = arith.constant 0 : index
      %c1 = arith.constant 1 : index
      %29 = vector.load %arg2[%c0_22, %c1] : memref<2x2xf32, #tpu.memory_space<vmem>>, vector<2x1xf32>
      %cst_23 = arith.constant 9.99999974E-6 : f32
      %30 = vector.broadcast %cst_23 : f32 to vector<2x1xf32>
      %31 = arith.addf %27, %30 : vector<2x1xf32>
      %32 = math.rsqrt %31 : vector<2x1xf32>
      %33 = arith.mulf %28, %32 : vector<2x1xf32>
      %34 = arith.mulf %22, %33 : vector<2x1xf32>
      %35 = arith.subf %29, %34 : vector<2x1xf32>
      %c0_24 = arith.constant 0 : index
      %c0_25 = arith.constant 0 : index
      %36 = vector.load %arg3[%c0_24, %c0_25] : memref<2x2xf32, #tpu.memory_space<vmem>>, vector<2x1xf32>
      tpu.vector_store %arg3[%c0_24, %c0_25], %33 {strides = array<i32>} : memref<2x2xf32, #tpu.memory_space<vmem>>, vector<2x1xf32>,
      %c0_26 = arith.constant 0 : index
      %c1_27 = arith.constant 1 : index
      %37 = vector.load %arg3[%c0_26, %c1_27] : memref<2x2xf32, #tpu.memory_space<vmem>>, vector<2x1xf32>
      tpu.vector_store %arg3[%c0_26, %c1_27], %35 {strides = array<i32>} : memref<2x2xf32, #tpu.memory_space<vmem>>, vector<2x1xf32>,
    } else {
    }
    return
  }
  func.func @transform_0(%arg0: i32) -> (i32, i32, i32) {
    %c0_i32 = arith.constant 0 : i32
    %c0_i32_0 = arith.constant 0 : i32
    %c0_i32_1 = arith.constant 0 : i32
    return %arg0, %c0_i32, %c0_i32_0 : i32, i32, i32
  }
  func.func @transform_1(%arg0: i32) -> (i32, i32) {
    %c0_i32 = arith.constant 0 : i32
    %c0_i32_0 = arith.constant 0 : i32
    %c0_i32_1 = arith.constant 0 : i32
    return %c0_i32, %c0_i32_0 : i32, i32
  }
  func.func @transform_2(%arg0: i32) -> (i32, i32) {
    %c0_i32 = arith.constant 0 : i32
    %c0_i32_0 = arith.constant 0 : i32
    %c0_i32_1 = arith.constant 0 : i32
    return %c0_i32, %c0_i32_0 : i32, i32
  }
}

</mosaic_0001>

<llo_original>
// kernel: tpu_custom_call.1
$region0: #{tpu_custom_call.1}
  #allocation0 [shape = 'u32[]', space=smem, size = 0x4, offset = 0x4, fixed_abs, tag = 'smem constant byte address 0x4 - core index']
  #allocation1 [shape = 'u32[72,128]{1,0:T(1,128)}', space=vmem, size = 0x9000, scoped, tag = 'internal scratch']
  #allocation2 [shape = 'f32[2,1]{1,0:T(2,128)}', space=vmem, size = 0x400, scoped, tag = 'scratch operand']
  #allocation3 [shape = 'f32[2,1]{1,0:T(2,128)}', space=vmem, size = 0x400, scoped, tag = 'scratch operand']
  %s0 = inlined_call_operand.hbm [shape: f32[2,4,256], index: 0, kind: input, shape index: {}]
  %s1 = inlined_call_operand.hbm [shape: f32[2,2], index: 1, kind: input, shape index: {}]
  %s2 = inlined_call_operand.hbm [shape: f32[2,2], index: 2, kind: output, shape index: {}]
  %s3 = sld [smem:[#allocation0]]
  $region57: #{tpu_custom_call.1} parent=0
    _
  %s5 = ssub.s32 1, %s3
  %s6 = scalar_select 0, %s5, %s3
  $region1: #{tpu_custom_call.1} parent=0
    #allocation4 [shape = 'u8[8192]{0}', space=vmem, size = 0x2000, scoped, tag = 'input window, operand 0']
    #allocation5 [shape = 's32[2]{0}', space=sflag, size = 0x8, scoped, tag = 'scoped memory for tpu_custom_call.1']
    #allocation6 [shape = 's32[2]{0}', space=sflag, size = 0x8, scoped, tag = 'scoped memory for tpu_custom_call.1']
    #allocation7 [shape = 'u8[1024]{0}', space=vmem, size = 0x400, scoped, tag = 'input window, operand 1, single buffered']
    #allocation8 [shape = 's32[1]{0}', space=sflag, size = 0x4, scoped, tag = 'scoped memory for tpu_custom_call.1']
    #allocation9 [shape = 'u8[1024]{0}', space=vmem, size = 0x400, scoped, tag = 'output window, operand 0, single buffered']
    %7 = vsyncpa [#allocation5], 0
    %s8 = scalar_lea.sflag [#allocation5], 1
    %9 = vsyncpa %s8, 0
    %10 = vsyncpa [#allocation8], 0
    %11 = vsyncpa [#allocation6], 0
    loop: start=0, step=1, limit=4
    $region2: #{tpu_custom_call.1} parent=1 // loop_pre_header
      _
    $region3: #{tpu_custom_call.1} parent=1 // loop_header
      %s13 = sphi 0, %s17
      %p14 = scmp.ge.s32.totalorder %s13, 4
      %s23 = sphi 0, %s25
      %s26 = sphi 0, %s23
      %s27 = sphi 0, %s26
      %s43 = sphi 0, %s27
      %s47 = sphi 0, %s47
      %s49 = sphi 0, %s47
      %s50 = sphi 0, %s49
      %s64 = sphi 0, %s50
      %s68 = sphi 0, %s68
      %s70 = sphi 0, %s68
      %s71 = sphi 0, %s70
      %s85 = sphi 0, %s71
    $region4: #{tpu_custom_call.1} parent=1 // loop_header_branch
      %16 = sbr.rel (%p14) target = $region8
    $region5: #{tpu_custom_call.1} parent=1 // loop_body
      %s18 = ssub.s32 %s13, 1
      %s19 = ssub.s32 %s13, 2
      %s20 = sadd.s32 %s13, 1
      %s21 = ssub.s32 %s13, %s20
      %p22 = scmp.eq.s32.totalorder %s21, 0
      %s24 = sadd.s32 %s23, 1
      %s25 = scalar_select %p22, %s23, %s24
      %p28 = pneg %p22
      %p29 = scmp.eq.s32.totalorder %s13, 1
      %p30 = por %p28, %p29
      %p31 = scmp.ne.s32.totalorder %s23, %s26
      %p32 = scmp.eq.s32.totalorder %s13, 0
      %p33 = por %p31, %p32
      %p34 = scmp.ne.s32.totalorder %s23, %s26
      %p35 = scmp.eq.s32.totalorder %s18, 1
      %p36 = por %p34, %p35
      %p37 = scmp.ne.s32.totalorder %s26, %s27
      %p38 = scmp.eq.s32.totalorder %s18, 0
      %p39 = por %p37, %p38
      %p40 = scmp.ne.s32.totalorder %s26, %s27
      %p41 = scmp.eq.s32.totalorder %s19, 1
      %p42 = por %p40, %p41
      %p44 = scmp.ne.s32.totalorder %s27, %s43
      %p45 = scmp.eq.s32.totalorder %s19, 0
      %p46 = por %p44, %p45
      %s48 = sadd.s32 %s47, 1
      %p51 = scmp.eq.s32.totalorder %s13, 1
      %p52 = scmp.ne.s32.totalorder %s47, %s49
      %p53 = scmp.eq.s32.totalorder %s13, 0
      %p54 = por %p52, %p53
      %p55 = scmp.ne.s32.totalorder %s47, %s49
      %p56 = scmp.eq.s32.totalorder %s18, 1
      %p57 = por %p55, %p56
      %p58 = scmp.ne.s32.totalorder %s49, %s50
      %p59 = scmp.eq.s32.totalorder %s18, 0
      %p60 = por %p58, %p59
      %p61 = scmp.ne.s32.totalorder %s49, %s50
      %p62 = scmp.eq.s32.totalorder %s19, 1
      %p63 = por %p61, %p62
      %p65 = scmp.ne.s32.totalorder %s50, %s64
      %p66 = scmp.eq.s32.totalorder %s19, 0
      %p67 = por %p65, %p66
      %s69 = sadd.s32 %s68, 1
      %p72 = scmp.eq.s32.totalorder %s13, 1
      %p73 = scmp.ne.s32.totalorder %s68, %s70
      %p74 = scmp.eq.s32.totalorder %s13, 0
      %p75 = por %p73, %p74
      %p76 = scmp.ne.s32.totalorder %s68, %s70
      %p77 = scmp.eq.s32.totalorder %s18, 1
      %p78 = por %p76, %p77
      %p79 = scmp.ne.s32.totalorder %s70, %s71
      %p80 = scmp.eq.s32.totalorder %s18, 0
      %p81 = por %p79, %p80
      %p82 = scmp.ne.s32.totalorder %s70, %s71
      %p83 = scmp.eq.s32.totalorder %s19, 1
      %p84 = por %p82, %p83
      %p86 = scmp.ne.s32.totalorder %s71, %s85
      %p87 = scmp.eq.s32.totalorder %s19, 0
      %p88 = por %p86, %p87
      %p89 = scmp.le.s32.totalorder 1, %s13
      %p90 = scmp.lt.s32.totalorder %s13, 3
      %p91 = pnand %p89, %p90
      %p92 = pneg %p91
      // Predicated region
      $region9: #{tpu_custom_call.1} parent=5 // pred_check
        _
      $region10: #{tpu_custom_call.1} parent=5 // pred_check_branch
        %94 = sbr.rel (%p91) target = $region12
      $region11: #{tpu_custom_call.1} parent=5 // pred_region
        %s95 = ssub.s32 %s13, 1
        // Predicated region
        $region13: #{tpu_custom_call.1} parent=11 // pred_check
          %p96 = pneg %p60
        $region14: #{tpu_custom_call.1} parent=11 // pred_check_branch
          %98 = sbr.rel (%p96) target = $region16
        $region15: #{tpu_custom_call.1} parent=11 // pred_region
          %100 = vsyncadd [#allocation8], 0
          %s102 = sshll.u32 %s1, 4
          %s103 = int_to_ptr.hbm [resolvable:$true] %s102
          %s104 = sshll.u32 [#allocation7], 4
          %s105 = int_to_ptr.vmem [resolvable:$true] %s104
          %107 = dma.hbm_to_vmem [thread:$0]  %s103, 32, %s105, [#allocation8]
        $region16: #{tpu_custom_call.1} parent=11 // pred_fallthru
          _
      $region12: #{tpu_custom_call.1} parent=5 // pred_fallthru
        _
      %p108 = scmp.lt.s32.totalorder %s13, 2
      // Predicated region
      $region17: #{tpu_custom_call.1} parent=5 // pred_check
        %p109 = pneg %p108
      $region18: #{tpu_custom_call.1} parent=5 // pred_check_branch
        %111 = sbr.rel (%p109) target = $region20
      $region19: #{tpu_custom_call.1} parent=5 // pred_region
        // Predicated region
        $region21: #{tpu_custom_call.1} parent=19 // pred_check
          %p112 = pneg %p33
        $region22: #{tpu_custom_call.1} parent=19 // pred_check_branch
          %114 = sbr.rel (%p112) target = $region24
        $region23: #{tpu_custom_call.1} parent=19 // pred_region
          %s115 = sand.u32 %s23, 1
          %s116 = scalar_lea.sflag [#allocation5], %s115
          %s117 = sand.u32 %s23, 1
          %s118 = smul.addr %s117, 8
          %s119 = scalar_lea.vmem [#allocation4], %s118
          %121 = vsyncadd %s116, 0
          %s122 = smul.addr %s13, 2
          %s123 = smul.addr %s122, 4
          %s124 = scalar_lea.hbm %s0, %s123
          %s126 = sshll.u32 %s124, 4
          %s127 = int_to_ptr.hbm [resolvable:$true] %s126
          %s128 = sshll.u32 %s119, 4
          %s129 = int_to_ptr.vmem [resolvable:$true] %s128
          %131 = dma.hbm_to_vmem [thread:$0]  %s127, 128, %s129, %s116
        $region24: #{tpu_custom_call.1} parent=19 // pred_fallthru
          _
      $region20: #{tpu_custom_call.1} parent=5 // pred_fallthru
        _
      %p132 = scmp.le.s32.totalorder 1, %s13
      %p133 = scmp.lt.s32.totalorder %s13, 3
      %p134 = pnand %p132, %p133
      %p135 = pneg %p134
      // Predicated region
      $region25: #{tpu_custom_call.1} parent=5 // pred_check
        _
      $region26: #{tpu_custom_call.1} parent=5 // pred_check_branch
        %137 = sbr.rel (%p134) target = $region28
      $region27: #{tpu_custom_call.1} parent=5 // pred_region
        %s138 = ssub.s32 %s13, 1
        %s139 = sand.u32 %s26, 1
        %s140 = scalar_lea.sflag [#allocation5], %s139
        %s141 = sand.u32 %s26, 1
        %s142 = smul.addr %s141, 8
        %s143 = scalar_lea.vmem [#allocation4], %s142
        // Predicated region
        $region29: #{tpu_custom_call.1} parent=27 // pred_check
          %p144 = pneg %p39
        $region30: #{tpu_custom_call.1} parent=27 // pred_check_branch
          %146 = sbr.rel (%p144) target = $region32
        $region31: #{tpu_custom_call.1} parent=27 // pred_region
          %148 = dma.done %s140, 128
        $region32: #{tpu_custom_call.1} parent=27 // pred_fallthru
          _
        // Predicated region
        $region33: #{tpu_custom_call.1} parent=27 // pred_check
          %p149 = pneg %p60
        $region34: #{tpu_custom_call.1} parent=27 // pred_check_branch
          %151 = sbr.rel (%p149) target = $region36
        $region35: #{tpu_custom_call.1} parent=27 // pred_region
          %153 = dma.done [#allocation8], 32
        $region36: #{tpu_custom_call.1} parent=27 // pred_fallthru
          _
        %s154 = sand.u32 %s26, 1
        %s155 = scalar_lea.sflag [#allocation5], %s154
        %s156 = sand.u32 %s26, 1
        %s157 = smul.addr %s156, 8
        %s158 = scalar_lea.vmem [#allocation4], %s157
        %p159 = pneg %p39
        %p160 = pneg %p36
        %p161 = pneg %p60
        %p162 = pneg %p57
        %p163 = pneg %p81
        %p164 = pneg %p78
        %p165 = scmp.eq.s32.totalorder %s18, 0
        // Predicated region
        $region37: #{tpu_custom_call.1} parent=27 // pred_check
          %p166 = pneg %p165
        $region38: #{tpu_custom_call.1} parent=27 // pred_check_branch
          %168 = sbr.rel (%p166) target = $region40
        $region39: #{tpu_custom_call.1} parent=27 // pred_region
          %vm169 = vcmask 1024
          %170 = vst.msk [vmem:[#allocation2] sm:$0x3] %vm169, 0.0
          %171 = vst.msk [vmem:[#allocation3] sm:$0x3] %vm169, 0.0
        $region40: #{tpu_custom_call.1} parent=27 // pred_fallthru
          _
        %v172 = vld [vmem:[%s143] sm:$0xcc]
        %v173 = vadd.f32 %v172, 0.0
        %v174 = vmul.f32 %v172, %v172
        %v175 = vadd.f32 %v174, 0.0
        %v176 = vld [vmem:[#allocation2] sm:$0x3]
        %178 = vst [vmem:[#allocation1] ss:$2 sm:$0xff] %v173
        %v179 = vld.sshfl [vmem:[#allocation1] sm:$0xff pattern:$0x75316420]
        %v180 = vld.sshfl [vmem:[#allocation1 + $0x8] sm:$0xff pattern:$0x75316420]
        %vm183 = vcmask 1043458
        %v184 = vsel %vm183, %v179, 0.0
        %v185 = vsel %vm183, %v180, 0.0
        %v186 = vadd.f32 %v184, %v185
        %187 = vadd.xlane.f32.xlu0 %v186
        %v188 = vpop.xlane.xlu0 %187
        %v190 = vrot.slane %v188, 2
        %v192 = vadd.f32 %v176, %v190
        %vm193 = vcmask 1024
        %194 = vst.msk [vmem:[#allocation2] sm:$0x3] %vm193, %v192
        %v195 = vld [vmem:[#allocation3] sm:$0x3]
        %197 = vst [vmem:[#allocation1] ss:$2 sm:$0xff] %v175
        %v198 = vld.sshfl [vmem:[#allocation1] sm:$0xff pattern:$0x75316420]
        %v199 = vld.sshfl [vmem:[#allocation1 + $0x8] sm:$0xff pattern:$0x75316420]
        %v202 = vsel %vm183, %v198, 0.0
        %v203 = vsel %vm183, %v199, 0.0
        %v204 = vadd.f32 %v202, %v203
        %205 = vadd.xlane.f32.xlu0 %v204
        %v206 = vpop.xlane.xlu0 %205
        %v208 = vrot.slane %v206, 2
        %v210 = vadd.f32 %v195, %v208
        %211 = vst.msk [vmem:[#allocation3] sm:$0x3] %vm193, %v210
        %p212 = scmp.eq.s32.totalorder %s18, 1
        // Predicated region
        $region41: #{tpu_custom_call.1} parent=27 // pred_check
          %p213 = pneg %p212
        $region42: #{tpu_custom_call.1} parent=27 // pred_check_branch
          %215 = sbr.rel (%p213) target = $region44
        $region43: #{tpu_custom_call.1} parent=27 // pred_region
          %v216 = vld [vmem:[#allocation2] sm:$0x3]
          %v217 = vmul.f32 %v216, 0.001953125
          %v218 = vld [vmem:[#allocation3] sm:$0x3]
          %v219 = vmul.f32 %v218, 0.001953125
          %v220 = vmul.f32 %v217, %v217
          %v221 = vsub.f32 %v219, %v220
          %v222 = vld [vmem:[#allocation7] sm:$0x3]
          %v223 = vadd.f32 %v221, 1e-05
          %v224 = vrsqrt.pop %v223
          %v225 = vmul.f32 %v224, %v223
          %v226 = vmul.f32 %v225, %v224
          %v227 = vmul.f32 0.5, %v226
          %v228 = vsub.f32 1.5, %v227
          %v229 = vmul.f32 %v224, %v228
          %vm230 = vweird.f32 %v223
          %vm231 = vweird.f32 %v224
          %vm232 = vmor %vm230, %vm231
          %v233 = vsel %vm232, %v224, %v229
          %v234 = vmul.f32 %v222, %v233
          %v235 = vmul.f32 %v217, %v234
          %237 = vrot.lane.b32.xlu0 %v235, 1
          %v238 = vpop.permute.xlu0 %237
          %v240 = vsub.f32 %v222, %v238
          %241 = vst.msk [vmem:[#allocation9] sm:$0x3] %vm193, %v234
          %vm242 = vcmask 9224
          %243 = vst.msk [vmem:[#allocation9] sm:$0x3] %vm242, %v240
        $region44: #{tpu_custom_call.1} parent=27 // pred_fallthru
          _
        // Predicated region
        $region45: #{tpu_custom_call.1} parent=27 // pred_check
          %p244 = pneg %p78
        $region46: #{tpu_custom_call.1} parent=27 // pred_check_branch
          %246 = sbr.rel (%p244) target = $region48
        $region47: #{tpu_custom_call.1} parent=27 // pred_region
          %248 = vsyncadd [#allocation6], 0
          %s250 = sshll.u32 [#allocation9], 4
          %s251 = int_to_ptr.vmem [resolvable:$true] %s250
          %s252 = sshll.u32 %s2, 4
          %s253 = int_to_ptr.hbm [resolvable:$true] %s252
          %255 = dma.vmem_to_hbm [thread:$0]  %s251, 32, %s253, [#allocation6]
        $region48: #{tpu_custom_call.1} parent=27 // pred_fallthru
          _
        // Predicated region
        $region49: #{tpu_custom_call.1} parent=27 // pred_check
          %p256 = pneg %p78
        $region50: #{tpu_custom_call.1} parent=27 // pred_check_branch
          %258 = sbr.rel (%p256) target = $region52
        $region51: #{tpu_custom_call.1} parent=27 // pred_region
          %260 = dma.done [#allocation6], 32
        $region52: #{tpu_custom_call.1} parent=27 // pred_fallthru
          _
      $region28: #{tpu_custom_call.1} parent=5 // pred_fallthru
        _
      %p261 = scmp.le.s32.totalorder 2, %s13
      // Predicated region
      $region53: #{tpu_custom_call.1} parent=5 // pred_check
        %p262 = pneg %p261
      $region54: #{tpu_custom_call.1} parent=5 // pred_check_branch
        %264 = sbr.rel (%p262) target = $region56
      $region55: #{tpu_custom_call.1} parent=5 // pred_region
        %s265 = ssub.s32 %s13, 2
      $region56: #{tpu_custom_call.1} parent=5 // pred_fallthru
        _
    $region6: #{tpu_custom_call.1} parent=1 // loop_footer
      %s17 = sadd.s32 1, %s13
    $region7: #{tpu_custom_call.1} parent=1 // loop_footer_branch
      %12 = sbr.rel target = $region3
    $region8: #{tpu_custom_call.1} parent=1 // loop_exit
      _
    %266 = vsyncpa [#allocation5], 1
    %s267 = scalar_lea.sflag [#allocation5], 1
    %268 = vsyncpa %s267, 1
    %269 = vsyncpa [#allocation8], 1
    %270 = vsyncpa [#allocation6], 1
    %s271 = scalar_lea.sflag [#allocation6], 1
    %272 = vsyncpa %s271, 1

</llo_original>
